<compile_context>
chip_gen: v7x
topology: tpu7x:2x2x1
jax: 0.10.0
libtpu: 0.0.40
codegen_flags: <defaults>
</compile_context>

<pallas_src>
import functools

import jax
import jax.numpy as jnp
from jax import lax
from jax.experimental import pallas as pl
from jax.experimental.pallas import tpu as pltpu


def _gram_last_dim(a, b):
    """a: (n, K), b: (m, K) -> (n, m) == a @ b.T, contracting last dims (no XLU transpose)."""
    return lax.dot_general(
        a, b,
        dimension_numbers=(((1,), (1,)), ((), ())),
        preferred_element_type=jnp.float32,
    )


def _ce_pairwise_kernel(C_total,
                        inputs_ref, targets_ref, feat_ref, out_ref,
                        m_sc, l_sc, g_sc, bv_sc, bi_sc, bl_sc):
    k = pl.program_id(0)
    n, tC = inputs_ref.shape
    masked_tail = (C_total % tC) != 0          # static Python bool -> specialized codegen

    # ---- init accumulators on the first class tile ----
    @pl.when(k == 0)
    def _init():
        m_sc[...] = jnp.full(m_sc.shape, -jnp.inf, dtype=jnp.float32)
        l_sc[...] = jnp.zeros(l_sc.shape, jnp.float32)
        g_sc[...] = jnp.zeros(g_sc.shape, jnp.float32)
        bv_sc[...] = jnp.full(bv_sc.shape, -1.0, dtype=jnp.float32)
        bi_sc[...] = jnp.zeros(bi_sc.shape, jnp.int32)
        bl_sc[...] = jnp.zeros(bl_sc.shape, jnp.float32)

    x = inputs_ref[...].astype(jnp.float32)    # (n, tC) raw logits (bf16 inputs upcast here)
    t = targets_ref[...].astype(jnp.float32)   # (n, tC) soft labels (assumed >= 0)

    gcol = k * tC + lax.broadcasted_iota(jnp.int32, (n, tC), 1)   # global class index
    if masked_tail:
        valid = gcol < C_total
        x = jnp.where(valid, x, -1e30)
        t = jnp.where(valid, t, 0.0)

    # ---- online softmax statistics (max + denominator); normalization deferred ----
    m_prev = m_sc[...]                                             # (n, 1)
    m_new = jnp.maximum(m_prev, jnp.max(x, axis=1, keepdims=True))
    alpha = jnp.exp(m_prev - m_new)                                # (n, 1) rescale factor
    ex = jnp.exp(x - m_new)                                        # (n, tC) un-normalized softmax
    l_sc[...] = alpha * l_sc[...] + jnp.sum(ex, axis=1, keepdims=True)

    # ---- online exp-Gram: g[i,j] = sum_c ex_i,c * ex_j,c (w.r.t. current per-row maxes) ----
    # TODO(synk): cast ex (and feat below) to bf16 for the MXU once re-validated vs 1e-4 tol.
    g_sc[...] = g_sc[...] * (alpha * alpha.T) + _gram_last_dim(ex, ex)

    # ---- online argmax(targets * softmax) == argmax(targets * ex) ----
    prod = t * ex                                                  # (n, tC), >= 0
    cur_max = jnp.max(prod, axis=1, keepdims=True)
    hit = prod == cur_max
    if masked_tail:
        hit = jnp.logical_and(hit, valid)
    cand_idx = jnp.min(jnp.where(hit, gcol, C_total), axis=1, keepdims=True)           # (n,1)
    cand_logit = jnp.sum(jnp.where(gcol == cand_idx, x, 0.0), axis=1, keepdims=True)   # raw logit

    bv = bv_sc[...] * alpha                    # bring previous best onto the current max scale
    take_new = jnp.logical_or(cur_max > bv, k == 0)
    bv_sc[...] = jnp.where(take_new, cur_max, bv)
    bi_sc[...] = jnp.where(take_new, cand_idx, bi_sc[...])
    bl_sc[...] = jnp.where(take_new, cand_logit, bl_sc[...])
    m_sc[...] = m_new

    # ---- epilogue: normalize, CE pick, pairwise term ----
    @pl.when(k == pl.num_programs(0) - 1)
    def _finalize():
        l = l_sc[...]                          # (n, 1) softmax denominator
        inv_l = pl.reciprocal(l)               # EUP slot; exact to keep the 1e-4 tolerance
        lse = m_sc[...] + jnp.log(l)           # (n, 1) per-row logsumexp
        ce = jnp.mean(lse - bl_sc[...])        # mean_i of -log_softmax[i, label_i]

        lab = bi_sc[...].astype(jnp.float32)   # exact for < 2^24 classes
        diff_mask = (lab != lab.T).astype(jnp.float32)          # (n, n): 1 iff labels differ

        sp = g_sc[...] * (inv_l * inv_l.T)     # (n, n) == softmax @ softmax.T

        f = feat_ref[...].astype(jnp.float32)  # (n, D) low-level features
        gram_f = _gram_last_dim(f, f)
        sq = jnp.sum(f * f, axis=1, keepdims=True)
        dist = jnp.exp(-(sq + sq.T - 2.0 * gram_f))             # RBF kernel, sigma = 1

        loss_pairwise = -jnp.mean(dist * sp * diff_mask)
        out_ref[...] = (ce + 2.0 * loss_pairwise).reshape(1, 1)


def cross_entropy_loss(inputs, targets, low_level_feat, *, class_block=None):
    """inputs: (n, C) logits, targets: (n, C) soft labels (>= 0), low_level_feat: (n, D).

    Inputs may be bf16 (halves HBM->VMEM DMA traffic); all math runs in f32 in-kernel.
    """
    n, C = inputs.shape
    D = low_level_feat.shape[1]

    if class_block is None:
        # Keep the whole class axis resident when it is modest (amortizes per-step overhead,
        # best on v5e/v6e's 128 MiB VMEM); otherwise tile it so the double-buffered (n, tC)
        # blocks + the (n, n) accumulator fit v7x's 64 MiB VMEM.
        class_block = C if C <= 4096 else 2048
    tC = min(class_block, C)
    if tC < C and tC % 128 != 0:
        raise ValueError("class_block must be a multiple of 128 when tiling the class axis")
    num_tiles = pl.cdiv(C, tC)

    # TODO(synk): add a 'parallel' row-tile grid axis (per-row-tile Gram rows + small (n, n)
    # epilogue kernel) to use v7x's second TensorCore; v5e/v6e have a single TC so it is
    # pure overhead there.
    grid_spec = pltpu.PrefetchScalarGridSpec(
        num_scalar_prefetch=0,
        grid=(num_tiles,),
        in_specs=[
            pl.BlockSpec((n, tC), lambda k: (0, k)),
            pl.BlockSpec((n, tC), lambda k: (0, k)),
            pl.BlockSpec((n, D), lambda k: (0, 0)),     # resident; fetched once
        ],
        out_specs=pl.BlockSpec((1, 1), lambda k: (0, 0)),
        scratch_shapes=[
            pltpu.VMEM((n, 1), jnp.float32),   # m: running row max
            pltpu.VMEM((n, 1), jnp.float32),   # l: running softmax denominator
            pltpu.VMEM((n, n), jnp.float32),   # g: un-normalized exp-Gram accumulator
            pltpu.VMEM((n, 1), jnp.float32),   # best value of targets * ex
            pltpu.VMEM((n, 1), jnp.int32),     # best (label) index
            pltpu.VMEM((n, 1), jnp.float32),   # raw logit at the label (CE pick)
        ],
    )
    out = pl.pallas_call(
        functools.partial(_ce_pairwise_kernel, C),
        out_shape=jax.ShapeDtypeStruct((1, 1), jnp.float32),
        grid_spec=grid_spec,
        compiler_params=pltpu.CompilerParams(
            dimension_semantics=("arbitrary",),          # class axis is a reduction
            vmem_limit_bytes=48 * 1024 * 1024,           # sized for v7x's 64 MiB VMEM
        ),
    )(inputs, targets, low_level_feat)
    return out[0, 0]


def _reference(inputs, targets, low_level_feat):
    """Pure-JAX reference mirroring the PyTorch forward."""
    sm = jax.nn.softmax(inputs, axis=1)
    labels = jnp.argmax(targets * sm, axis=-1)
    mask = 1.0 - (labels[None, :] == labels[:, None]).astype(jnp.float32)
    sq = jnp.sum(low_level_feat ** 2, axis=1, keepdims=True)
    dist = sq + sq.T - 2.0 * low_level_feat @ low_level_feat.T
    dist = jnp.exp(-dist / 1.0)
    inner_prod = -(sm @ sm.T)
    loss_pairwise = jnp.mean(dist * inner_prod * mask)
    logsm = jax.nn.log_softmax(inputs, axis=1)
    ce = jnp.mean(-jnp.take_along_axis(logsm, labels[:, None], axis=1))
    return ce + 2.0 * loss_pairwise


if __name__ == "__main__":
    key = jax.random.PRNGKey(0)
    k1, k2, k3 = jax.random.split(key, 3)

    n, C, D = 8, 256, 32
    inputs = jax.random.normal(k1, (n, C), dtype=jnp.float32)
    targets = jax.nn.softmax(jax.random.normal(k2, (n, C), dtype=jnp.float32), axis=1)
    # Scale features so the RBF term is not vanishingly small (stronger correctness check).
    low_level_feat = 0.2 * jax.random.normal(k3, (n, D), dtype=jnp.float32)

    ref = _reference(inputs, targets, low_level_feat)

    # Multi-tile path: exercises the online softmax / argmax / exp-Gram accumulation.
    loss_tiled = cross_entropy_loss(inputs, targets, low_level_feat, class_block=128)
    loss_tiled = jax.block_until_ready(loss_tiled)
    assert jnp.allclose(loss_tiled, ref, atol=1e-4, rtol=1e-4), (loss_tiled, ref)

    # Single-tile path: full class axis resident (default heuristic for modest C).
    loss_full = cross_entropy_loss(inputs, targets, low_level_feat)
    loss_full = jax.block_until_ready(loss_full)
    assert jnp.allclose(loss_full, ref, atol=1e-4, rtol=1e-4), (loss_full, ref)

    print("KERNEL_OK")
</pallas_src>

<mosaic_0001>
module attributes {stable_mosaic.version = 11 : i64} {
  func.func @_ce_pairwise_kernel(%arg0: i32, %arg1: memref<8x128xf32, #tpu.memory_space<vmem>>, %arg2: memref<8x128xf32, #tpu.memory_space<vmem>>, %arg3: memref<8x32xf32, #tpu.memory_space<vmem>>, %arg4: memref<1x1xf32, #tpu.memory_space<vmem>>, %arg5: memref<8x1xf32, #tpu.memory_space<vmem>>, %arg6: memref<8x1xf32, #tpu.memory_space<vmem>>, %arg7: memref<8x8xf32, #tpu.memory_space<vmem>>, %arg8: memref<8x1xf32, #tpu.memory_space<vmem>>, %arg9: memref<8x1xi32, #tpu.memory_space<vmem>>, %arg10: memref<8x1xf32, #tpu.memory_space<vmem>>) attributes {dimension_semantics = [#tpu.dimension_semantics<arbitrary>], iteration_bounds = array<i64: 2>, scalar_prefetch = 0 : i64, scratch_operands = 6 : i64, tpu.core_type = #tpu.core_type<tc>, window_params = [{transform_indices = @transform_0, window_bounds = array<i64: 8, 128>}, {transform_indices = @transform_1, window_bounds = array<i64: 8, 128>}, {pipeline_mode = #tpu.pipeline_mode<synchronous>, transform_indices = @transform_2, window_bounds = array<i64: 8, 32>}, {pipeline_mode = #tpu.pipeline_mode<synchronous>, transform_indices = @transform_3, window_bounds = array<i64: 1, 1>}]} {
    %c0_i32 = arith.constant 0 : i32
    %0 = arith.cmpi eq, %arg0, %c0_i32 : i32
    %1 = arith.extui %0 : i1 to i32
    %c0_i32_0 = arith.constant 0 : i32
    %2 = arith.cmpi ne, %1, %c0_i32_0 : i32
    scf.if %2 {
      %cst_36 = arith.constant 0xFF800000 : f32
      %66 = vector.broadcast %cst_36 : f32 to vector<8x1xf32>
      %c0_37 = arith.constant 0 : index
      %c0_38 = arith.constant 0 : index
      %67 = vector.load %arg5[%c0_37, %c0_38] : memref<8x1xf32, #tpu.memory_space<vmem>>, vector<8x1xf32>
      tpu.vector_store %arg5[%c0_37, %c0_38], %66 {strides = array<i32>} : memref<8x1xf32, #tpu.memory_space<vmem>>, vector<8x1xf32>,
      %cst_39 = arith.constant 0.000000e+00 : f32
      %68 = vector.broadcast %cst_39 : f32 to vector<8x1xf32>
      %c0_40 = arith.constant 0 : index
      %c0_41 = arith.constant 0 : index
      %69 = vector.load %arg6[%c0_40, %c0_41] : memref<8x1xf32, #tpu.memory_space<vmem>>, vector<8x1xf32>
      tpu.vector_store %arg6[%c0_40, %c0_41], %68 {strides = array<i32>} : memref<8x1xf32, #tpu.memory_space<vmem>>, vector<8x1xf32>,
      %cst_42 = arith.constant 0.000000e+00 : f32
      %70 = vector.broadcast %cst_42 : f32 to vector<8x8xf32>
      %c0_43 = arith.constant 0 : index
      %c0_44 = arith.constant 0 : index
      %71 = vector.load %arg7[%c0_43, %c0_44] : memref<8x8xf32, #tpu.memory_space<vmem>>, vector<8x8xf32>
      tpu.vector_store %arg7[%c0_43, %c0_44], %70 {strides = array<i32>} : memref<8x8xf32, #tpu.memory_space<vmem>>, vector<8x8xf32>,
      %cst_45 = arith.constant -1.000000e+00 : f32
      %72 = vector.broadcast %cst_45 : f32 to vector<8x1xf32>
      %c0_46 = arith.constant 0 : index
      %c0_47 = arith.constant 0 : index
      %73 = vector.load %arg8[%c0_46, %c0_47] : memref<8x1xf32, #tpu.memory_space<vmem>>, vector<8x1xf32>
      tpu.vector_store %arg8[%c0_46, %c0_47], %72 {strides = array<i32>} : memref<8x1xf32, #tpu.memory_space<vmem>>, vector<8x1xf32>,
      %c0_i32_48 = arith.constant 0 : i32
      %74 = vector.broadcast %c0_i32_48 : i32 to vector<8x1xi32>
      %c0_49 = arith.constant 0 : index
      %c0_50 = arith.constant 0 : index
      %75 = vector.load %arg9[%c0_49, %c0_50] : memref<8x1xi32, #tpu.memory_space<vmem>>, vector<8x1xi32>
      tpu.vector_store %arg9[%c0_49, %c0_50], %74 {strides = array<i32>} : memref<8x1xi32, #tpu.memory_space<vmem>>, vector<8x1xi32>,
      %cst_51 = arith.constant 0.000000e+00 : f32
      %76 = vector.broadcast %cst_51 : f32 to vector<8x1xf32>
      %c0_52 = arith.constant 0 : index
      %c0_53 = arith.constant 0 : index
      %77 = vector.load %arg10[%c0_52, %c0_53] : memref<8x1xf32, #tpu.memory_space<vmem>>, vector<8x1xf32>
      tpu.vector_store %arg10[%c0_52, %c0_53], %76 {strides = array<i32>} : memref<8x1xf32, #tpu.memory_space<vmem>>, vector<8x1xf32>,
    } else {
    }
    %c0 = arith.constant 0 : index
    %c0_1 = arith.constant 0 : index
    %3 = vector.load %arg1[%c0, %c0_1] : memref<8x128xf32, #tpu.memory_space<vmem>>, vector<8x128xf32>
    %c0_2 = arith.constant 0 : index
    %c0_3 = arith.constant 0 : index
    %4 = vector.load %arg2[%c0_2, %c0_3] : memref<8x128xf32, #tpu.memory_space<vmem>>, vector<8x128xf32>
    %c128_i32 = arith.constant 128 : i32
    %5 = arith.muli %arg0, %c128_i32 : i32
    %6 = tpu.iota {dimensions = array<i32: 1>} : vector<8x128xi32>
    %7 = vector.broadcast %5 : i32 to vector<8x128xi32>
    %8 = arith.addi %7, %6 : vector<8x128xi32>
    %c0_4 = arith.constant 0 : index
    %c0_5 = arith.constant 0 : index
    %9 = vector.load %arg5[%c0_4, %c0_5] : memref<8x1xf32, #tpu.memory_space<vmem>>, vector<8x1xf32>
    %cst = arith.constant dense<0xFF800000> : vector<8xf32>
    %10 = vector.multi_reduction <maximumf>, %3, %cst [1] : vector<8x128xf32> to vector<8xf32>
    %11 = vector.shape_cast %10 : vector<8xf32> to vector<8x1xf32>
    %12 = arith.maximumf %9, %11 : vector<8x1xf32>
    %13 = arith.subf %9, %12 : vector<8x1xf32>
    %14 = math.exp %13 : vector<8x1xf32>
    %15 = vector.broadcast %12 : vector<8x1xf32> to vector<8x128xf32>
    %16 = arith.subf %3, %15 : vector<8x128xf32>
    %17 = math.exp %16 : vector<8x128xf32>
    %c0_6 = arith.constant 0 : index
    %c0_7 = arith.constant 0 : index
    %18 = vector.load %arg6[%c0_6, %c0_7] : memref<8x1xf32, #tpu.memory_space<vmem>>, vector<8x1xf32>
    %19 = arith.mulf %14, %18 : vector<8x1xf32>
    %cst_8 = arith.constant dense<0.000000e+00> : vector<8xf32>
    %20 = vector.multi_reduction <add>, %17, %cst_8 [1] : vector<8x128xf32> to vector<8xf32>
    %21 = vector.shape_cast %20 : vector<8xf32> to vector<8x1xf32>
    %22 = arith.addf %19, %21 : vector<8x1xf32>
    %c0_9 = arith.constant 0 : index
    %c0_10 = arith.constant 0 : index
    %23 = vector.load %arg6[%c0_9, %c0_10] : memref<8x1xf32, #tpu.memory_space<vmem>>, vector<8x1xf32>
    tpu.vector_store %arg6[%c0_9, %c0_10], %22 {strides = array<i32>} : memref<8x1xf32, #tpu.memory_space<vmem>>, vector<8x1xf32>,
    %c0_11 = arith.constant 0 : index
    %c0_12 = arith.constant 0 : index
    %24 = vector.load %arg7[%c0_11, %c0_12] : memref<8x8xf32, #tpu.memory_space<vmem>>, vector<8x8xf32>
    %25 = tpu.transpose %14, [1, 0] : vector<8x1xf32> -> vector<1x8xf32>
    %26 = vector.broadcast %14 : vector<8x1xf32> to vector<8x8xf32>
    %27 = vector.broadcast %25 : vector<1x8xf32> to vector<8x8xf32>
    %28 = arith.mulf %26, %27 : vector<8x8xf32>
    %29 = arith.mulf %24, %28 : vector<8x8xf32>
    %cst_13 = arith.constant dense<0.000000e+00> : vector<8x8xf32>
    %30 = tpu.matmul %17, %17, %cst_13 {dimension_numbers = #tpu.dot_dimension_numbers<[1], [1], [0], [0], [0, 0, 1, 0], [], []>} : vector<8x128xf32>, vector<8x128xf32>, vector<8x8xf32> -> vector<8x8xf32>
    %31 = arith.addf %29, %30 : vector<8x8xf32>
    %c0_14 = arith.constant 0 : index
    %c0_15 = arith.constant 0 : index
    %32 = vector.load %arg7[%c0_14, %c0_15] : memref<8x8xf32, #tpu.memory_space<vmem>>, vector<8x8xf32>
    tpu.vector_store %arg7[%c0_14, %c0_15], %31 {strides = array<i32>} : memref<8x8xf32, #tpu.memory_space<vmem>>, vector<8x8xf32>,
    %33 = arith.mulf %4, %17 : vector<8x128xf32>
    %cst_16 = arith.constant dense<0xFF800000> : vector<8xf32>
    %34 = vector.multi_reduction <maximumf>, %33, %cst_16 [1] : vector<8x128xf32> to vector<8xf32>
    %35 = vector.shape_cast %34 : vector<8xf32> to vector<8x1xf32>
    %36 = vector.broadcast %35 : vector<8x1xf32> to vector<8x128xf32>
    %37 = arith.cmpf oeq, %33, %36 : vector<8x128xf32>
    %c256_i32 = arith.constant 256 : i32
    %38 = vector.broadcast %c256_i32 : i32 to vector<8x128xi32>
    %39 = arith.select %37, %8, %38 : vector<8x128xi1>, vector<8x128xi32>
    %cst_17 = arith.constant dense<2147483647> : vector<8xi32>
    %40 = vector.multi_reduction <minsi>, %39, %cst_17 [1] : vector<8x128xi32> to vector<8xi32>
    %41 = vector.shape_cast %40 : vector<8xi32> to vector<8x1xi32>
    %42 = vector.broadcast %41 : vector<8x1xi32> to vector<8x128xi32>
    %43 = arith.cmpi eq, %8, %42 : vector<8x128xi32>
    %cst_18 = arith.constant 0.000000e+00 : f32
    %44 = vector.broadcast %cst_18 : f32 to vector<8x128xf32>
    %45 = arith.select %43, %3, %44 : vector<8x128xi1>, vector<8x128xf32>
    %cst_19 = arith.constant dense<0.000000e+00> : vector<8xf32>
    %46 = vector.multi_reduction <add>, %45, %cst_19 [1] : vector<8x128xf32> to vector<8xf32>
    %47 = vector.shape_cast %46 : vector<8xf32> to vector<8x1xf32>
    %c0_20 = arith.constant 0 : index
    %c0_21 = arith.constant 0 : index
    %48 = vector.load %arg8[%c0_20, %c0_21] : memref<8x1xf32, #tpu.memory_space<vmem>>, vector<8x1xf32>
    %49 = arith.mulf %48, %14 : vector<8x1xf32>
    %50 = arith.cmpf ogt, %35, %49 : vector<8x1xf32>
    %c0_i32_22 = arith.constant 0 : i32
    %51 = arith.cmpi eq, %arg0, %c0_i32_22 : i32
    %52 = vector.broadcast %51 : i1 to vector<8x1xi1>
    %53 = arith.ori %50, %52 : vector<8x1xi1>
    %54 = arith.select %53, %35, %49 : vector<8x1xi1>, vector<8x1xf32>
    %c0_23 = arith.constant 0 : index
    %c0_24 = arith.constant 0 : index
    %55 = vector.load %arg8[%c0_23, %c0_24] : memref<8x1xf32, #tpu.memory_space<vmem>>, vector<8x1xf32>
    tpu.vector_store %arg8[%c0_23, %c0_24], %54 {strides = array<i32>} : memref<8x1xf32, #tpu.memory_space<vmem>>, vector<8x1xf32>,
    %c0_25 = arith.constant 0 : index
    %c0_26 = arith.constant 0 : index
    %56 = vector.load %arg9[%c0_25, %c0_26] : memref<8x1xi32, #tpu.memory_space<vmem>>, vector<8x1xi32>
    %57 = arith.select %53, %41, %56 : vector<8x1xi1>, vector<8x1xi32>
    %c0_27 = arith.constant 0 : index
    %c0_28 = arith.constant 0 : index
    %58 = vector.load %arg9[%c0_27, %c0_28] : memref<8x1xi32, #tpu.memory_space<vmem>>, vector<8x1xi32>
    tpu.vector_store %arg9[%c0_27, %c0_28], %57 {strides = array<i32>} : memref<8x1xi32, #tpu.memory_space<vmem>>, vector<8x1xi32>,
    %c0_29 = arith.constant 0 : index
    %c0_30 = arith.constant 0 : index
    %59 = vector.load %arg10[%c0_29, %c0_30] : memref<8x1xf32, #tpu.memory_space<vmem>>, vector<8x1xf32>
    %60 = arith.select %53, %47, %59 : vector<8x1xi1>, vector<8x1xf32>
    %c0_31 = arith.constant 0 : index
    %c0_32 = arith.constant 0 : index
    %61 = vector.load %arg10[%c0_31, %c0_32] : memref<8x1xf32, #tpu.memory_space<vmem>>, vector<8x1xf32>
    tpu.vector_store %arg10[%c0_31, %c0_32], %60 {strides = array<i32>} : memref<8x1xf32, #tpu.memory_space<vmem>>, vector<8x1xf32>,
    %c0_33 = arith.constant 0 : index
    %c0_34 = arith.constant 0 : index
    %62 = vector.load %arg5[%c0_33, %c0_34] : memref<8x1xf32, #tpu.memory_space<vmem>>, vector<8x1xf32>
    tpu.vector_store %arg5[%c0_33, %c0_34], %12 {strides = array<i32>} : memref<8x1xf32, #tpu.memory_space<vmem>>, vector<8x1xf32>,
    %c1_i32 = arith.constant 1 : i32
    %63 = arith.cmpi eq, %arg0, %c1_i32 : i32
    %64 = arith.extui %63 : i1 to i32
    %c0_i32_35 = arith.constant 0 : i32
    %65 = arith.cmpi ne, %64, %c0_i32_35 : i32
    scf.if %65 {
      %c0_36 = arith.constant 0 : index
      %c0_37 = arith.constant 0 : index
      %66 = vector.load %arg6[%c0_36, %c0_37] : memref<8x1xf32, #tpu.memory_space<vmem>>, vector<8x1xf32>
      %67 = tpu.reciprocal %66 : vector<8x1xf32> -> vector<8x1xf32>
      %c0_38 = arith.constant 0 : index
      %c0_39 = arith.constant 0 : index
      %68 = vector.load %arg5[%c0_38, %c0_39] : memref<8x1xf32, #tpu.memory_space<vmem>>, vector<8x1xf32>
      %69 = math.log %66 : vector<8x1xf32>
      %70 = arith.addf %68, %69 : vector<8x1xf32>
      %c0_40 = arith.constant 0 : index
      %c0_41 = arith.constant 0 : index
      %71 = vector.load %arg10[%c0_40, %c0_41] : memref<8x1xf32, #tpu.memory_space<vmem>>, vector<8x1xf32>
      %72 = arith.subf %70, %71 : vector<8x1xf32>
      %73 = vector.shape_cast %72 : vector<8x1xf32> to vector<1x8x1xf32>
      %cst_42 = arith.constant dense<0.000000e+00> : vector<1xf32>
      %74 = vector.multi_reduction <add>, %73, %cst_42 [1, 2] : vector<1x8x1xf32> to vector<1xf32>
      %75 = vector.shape_cast %74 : vector<1xf32> to vector<1x1x1xf32>
      %76 = vector.extract %75[0, 0, 0] : f32 from vector<1x1x1xf32>
      %cst_43 = arith.constant 8.000000e+00 : f32
      %77 = arith.divf %76, %cst_43 : f32
      %c0_44 = arith.constant 0 : index
      %c0_45 = arith.constant 0 : index
      %78 = vector.load %arg9[%c0_44, %c0_45] : memref<8x1xi32, #tpu.memory_space<vmem>>, vector<8x1xi32>
      %79 = arith.sitofp %78 : vector<8x1xi32> to vector<8x1xf32>
      %80 = tpu.transpose %79, [1, 0] : vector<8x1xf32> -> vector<1x8xf32>
      %81 = vector.broadcast %79 : vector<8x1xf32> to vector<8x8xf32>
      %82 = vector.broadcast %80 : vector<1x8xf32> to vector<8x8xf32>
      %83 = arith.cmpf one, %81, %82 : vector<8x8xf32>
      %84 = arith.extui %83 : vector<8x8xi1> to vector<8x8xi32>
      %85 = arith.sitofp %84 : vector<8x8xi32> to vector<8x8xf32>
      %c0_46 = arith.constant 0 : index
      %c0_47 = arith.constant 0 : index
      %86 = vector.load %arg7[%c0_46, %c0_47] : memref<8x8xf32, #tpu.memory_space<vmem>>, vector<8x8xf32>
      %87 = tpu.transpose %67, [1, 0] : vector<8x1xf32> -> vector<1x8xf32>
      %88 = vector.broadcast %67 : vector<8x1xf32> to vector<8x8xf32>
      %89 = vector.broadcast %87 : vector<1x8xf32> to vector<8x8xf32>
      %90 = arith.mulf %88, %89 : vector<8x8xf32>
      %91 = arith.mulf %86, %90 : vector<8x8xf32>
      %c0_48 = arith.constant 0 : index
      %c0_49 = arith.constant 0 : index
      %92 = vector.load %arg3[%c0_48, %c0_49] : memref<8x32xf32, #tpu.memory_space<vmem>>, vector<8x32xf32>
      %cst_50 = arith.constant dense<0.000000e+00> : vector<8x8xf32>
      %93 = tpu.matmul %92, %92, %cst_50 {dimension_numbers = #tpu.dot_dimension_numbers<[1], [1], [0], [0], [0, 0, 1, 0], [], []>} : vector<8x32xf32>, vector<8x32xf32>, vector<8x8xf32> -> vector<8x8xf32>
      %94 = arith.mulf %92, %92 : vector<8x32xf32>
      %cst_51 = arith.constant dense<0.000000e+00> : vector<8xf32>
      %95 = vector.multi_reduction <add>, %94, %cst_51 [1] : vector<8x32xf32> to vector<8xf32>
      %96 = vector.shape_cast %95 : vector<8xf32> to vector<8x1xf32>
      %97 = tpu.transpose %96, [1, 0] : vector<8x1xf32> -> vector<1x8xf32>
      %98 = vector.broadcast %96 : vector<8x1xf32> to vector<8x8xf32>
      %99 = vector.broadcast %97 : vector<1x8xf32> to vector<8x8xf32>
      %100 = arith.addf %98, %99 : vector<8x8xf32>
      %cst_52 = arith.constant 2.000000e+00 : f32
      %101 = vector.broadcast %cst_52 : f32 to vector<8x8xf32>
      %102 = arith.mulf %101, %93 : vector<8x8xf32>
      %103 = arith.subf %100, %102 : vector<8x8xf32>
      %cst_53 = arith.constant 0.000000e+00 : f32
      %104 = vector.broadcast %cst_53 : f32 to vector<8x8xf32>
      %105 = arith.subf %104, %103 : vector<8x8xf32>
      %106 = math.exp %105 : vector<8x8xf32>
      %107 = arith.mulf %106, %91 : vector<8x8xf32>
      %108 = arith.mulf %107, %85 : vector<8x8xf32>
      %109 = vector.shape_cast %108 : vector<8x8xf32> to vector<1x8x8xf32>
      %cst_54 = arith.constant dense<0.000000e+00> : vector<1xf32>
      %110 = vector.multi_reduction <add>, %109, %cst_54 [1, 2] : vector<1x8x8xf32> to vector<1xf32>
      %111 = vector.shape_cast %110 : vector<1xf32> to vector<1x1x1xf32>
      %112 = vector.extract %111[0, 0, 0] : f32 from vector<1x1x1xf32>
      %cst_55 = arith.constant 6.400000e+01 : f32
      %113 = arith.divf %112, %cst_55 : f32
      %cst_56 = arith.constant 0.000000e+00 : f32
      %114 = arith.subf %cst_56, %113 : f32
      %cst_57 = arith.constant 2.000000e+00 : f32
      %115 = arith.mulf %cst_57, %114 : f32
      %116 = arith.addf %77, %115 : f32
      %117 = vector.broadcast %116 : f32 to vector<1x1xf32>
      %c0_58 = arith.constant 0 : index
      %c0_59 = arith.constant 0 : index
      %118 = vector.load %arg4[%c0_58, %c0_59] : memref<1x1xf32, #tpu.memory_space<vmem>>, vector<1x1xf32>
      tpu.vector_store %arg4[%c0_58, %c0_59], %117 {strides = array<i32>} : memref<1x1xf32, #tpu.memory_space<vmem>>, vector<1x1xf32>,
    } else {
    }
    return
  }
  func.func @transform_0(%arg0: i32) -> (i32, i32) {
    %c0_i32 = arith.constant 0 : i32
    %c0_i32_0 = arith.constant 0 : i32
    return %c0_i32, %arg0 : i32, i32
  }
  func.func @transform_1(%arg0: i32) -> (i32, i32) {
    %c0_i32 = arith.constant 0 : i32
    %c0_i32_0 = arith.constant 0 : i32
    return %c0_i32, %arg0 : i32, i32
  }
  func.func @transform_2(%arg0: i32) -> (i32, i32) {
    %c0_i32 = arith.constant 0 : i32
    %c0_i32_0 = arith.constant 0 : i32
    %c0_i32_1 = arith.constant 0 : i32
    return %c0_i32, %c0_i32_0 : i32, i32
  }
  func.func @transform_3(%arg0: i32) -> (i32, i32) {
    %c0_i32 = arith.constant 0 : i32
    %c0_i32_0 = arith.constant 0 : i32
    %c0_i32_1 = arith.constant 0 : i32
    return %c0_i32, %c0_i32_0 : i32, i32
  }
}

</mosaic_0001>

<llo_original>
// kernel: tpu_custom_call.1
$region0: #{tpu_custom_call.1}
  #allocation0 [shape = 'u32[]', space=smem, size = 0x4, offset = 0x4, fixed_abs, tag = 'smem constant byte address 0x4 - core index']
  #allocation1 [shape = 'u32[144,128]{1,0:T(1,128)}', space=vmem, size = 0x12000, scoped, tag = 'internal scratch']
  #allocation2 [shape = 'f32[8,1]{1,0:T(8,128)}', space=vmem, size = 0x1000, scoped, tag = 'scratch operand']
  #allocation3 [shape = 'f32[8,1]{1,0:T(8,128)}', space=vmem, size = 0x1000, scoped, tag = 'scratch operand']
  #allocation4 [shape = 'f32[8,8]{1,0:T(8,128)}', space=vmem, size = 0x1000, scoped, tag = 'scratch operand']
  #allocation5 [shape = 'f32[8,1]{1,0:T(8,128)}', space=vmem, size = 0x1000, scoped, tag = 'scratch operand']
  #allocation6 [shape = 's32[8,1]{1,0:T(8,128)}', space=vmem, size = 0x1000, scoped, tag = 'scratch operand']
  #allocation7 [shape = 'f32[8,1]{1,0:T(8,128)}', space=vmem, size = 0x1000, scoped, tag = 'scratch operand']
  %s0 = inlined_call_operand.hbm [shape: f32[8,256], index: 0, kind: input, shape index: {}]
  %s1 = inlined_call_operand.hbm [shape: f32[8,256], index: 1, kind: input, shape index: {}]
  %s2 = inlined_call_operand.hbm [shape: f32[8,32], index: 2, kind: input, shape index: {}]
  %s3 = inlined_call_operand.hbm [shape: f32[1,1], index: 3, kind: output, shape index: {}]
  %s4 = sld [smem:[#allocation0]]
  $region65: #{tpu_custom_call.1} parent=0
    _
  %s6 = ssub.s32 1, %s4
  %s7 = scalar_select 0, %s6, %s4
  $region1: #{tpu_custom_call.1} parent=0
    #allocation8 [shape = 'u8[8192]{0}', space=vmem, size = 0x2000, scoped, tag = 'input window, operand 0']
    #allocation9 [shape = 's32[2]{0}', space=sflag, size = 0x8, scoped, tag = 'scoped memory for tpu_custom_call.1']
    #allocation10 [shape = 's32[2]{0}', space=sflag, size = 0x8, scoped, tag = 'scoped memory for tpu_custom_call.1']
    #allocation11 [shape = 'u8[8192]{0}', space=vmem, size = 0x2000, scoped, tag = 'input window, operand 1']
    #allocation12 [shape = 's32[2]{0}', space=sflag, size = 0x8, scoped, tag = 'scoped memory for tpu_custom_call.1']
    #allocation13 [shape = 'u8[4096]{0}', space=vmem, size = 0x1000, scoped, tag = 'input window, operand 2, single buffered']
    #allocation14 [shape = 'u8[512]{0}', space=vmem, size = 0x400, scoped, tag = 'output window, operand 0, single buffered']
    %8 = vsyncpa [#allocation9], 0
    %s9 = scalar_lea.sflag [#allocation9], 1
    %10 = vsyncpa %s9, 0
    %11 = vsyncpa [#allocation12], 0
    %s12 = scalar_lea.sflag [#allocation12], 1
    %13 = vsyncpa %s12, 0
    %14 = vsyncpa [#allocation10], 0
    loop: start=0, step=1, limit=4
    $region2: #{tpu_custom_call.1} parent=1 // loop_pre_header
      _
    $region3: #{tpu_custom_call.1} parent=1 // loop_header
      %s16 = sphi 0, %s20
      %p17 = scmp.ge.s32.totalorder %s16, 4
      %s26 = sphi 0, %s28
      %s29 = sphi 0, %s26
      %s30 = sphi 0, %s29
      %s46 = sphi 0, %s30
      %s52 = sphi 0, %s54
      %s55 = sphi 0, %s52
      %s56 = sphi 0, %s55
      %s72 = sphi 0, %s56
      %s76 = sphi 0, %s76
      %s78 = sphi 0, %s76
      %s79 = sphi 0, %s78
      %s93 = sphi 0, %s79
      %s97 = sphi 0, %s97
      %s99 = sphi 0, %s97
      %s100 = sphi 0, %s99
      %s114 = sphi 0, %s100
    $region4: #{tpu_custom_call.1} parent=1 // loop_header_branch
      %19 = sbr.rel (%p17) target = $region8
    $region5: #{tpu_custom_call.1} parent=1 // loop_body
      %s21 = ssub.s32 %s16, 1
      %s22 = ssub.s32 %s16, 2
      %s23 = sadd.s32 %s16, 1
      %s24 = ssub.s32 %s16, %s23
      %p25 = scmp.eq.s32.totalorder %s24, 0
      %s27 = sadd.s32 %s26, 1
      %s28 = scalar_select %p25, %s26, %s27
      %p31 = pneg %p25
      %p32 = scmp.eq.s32.totalorder %s16, 1
      %p33 = por %p31, %p32
      %p34 = scmp.ne.s32.totalorder %s26, %s29
      %p35 = scmp.eq.s32.totalorder %s16, 0
      %p36 = por %p34, %p35
      %p37 = scmp.ne.s32.totalorder %s26, %s29
      %p38 = scmp.eq.s32.totalorder %s21, 1
      %p39 = por %p37, %p38
      %p40 = scmp.ne.s32.totalorder %s29, %s30
      %p41 = scmp.eq.s32.totalorder %s21, 0
      %p42 = por %p40, %p41
      %p43 = scmp.ne.s32.totalorder %s29, %s30
      %p44 = scmp.eq.s32.totalorder %s22, 1
      %p45 = por %p43, %p44
      %p47 = scmp.ne.s32.totalorder %s30, %s46
      %p48 = scmp.eq.s32.totalorder %s22, 0
      %p49 = por %p47, %p48
      %s50 = ssub.s32 %s16, %s23
      %p51 = scmp.eq.s32.totalorder %s50, 0
      %s53 = sadd.s32 %s52, 1
      %s54 = scalar_select %p51, %s52, %s53
      %p57 = pneg %p51
      %p58 = scmp.eq.s32.totalorder %s16, 1
      %p59 = por %p57, %p58
      %p60 = scmp.ne.s32.totalorder %s52, %s55
      %p61 = scmp.eq.s32.totalorder %s16, 0
      %p62 = por %p60, %p61
      %p63 = scmp.ne.s32.totalorder %s52, %s55
      %p64 = scmp.eq.s32.totalorder %s21, 1
      %p65 = por %p63, %p64
      %p66 = scmp.ne.s32.totalorder %s55, %s56
      %p67 = scmp.eq.s32.totalorder %s21, 0
      %p68 = por %p66, %p67
      %p69 = scmp.ne.s32.totalorder %s55, %s56
      %p70 = scmp.eq.s32.totalorder %s22, 1
      %p71 = por %p69, %p70
      %p73 = scmp.ne.s32.totalorder %s56, %s72
      %p74 = scmp.eq.s32.totalorder %s22, 0
      %p75 = por %p73, %p74
      %s77 = sadd.s32 %s76, 1
      %p80 = scmp.eq.s32.totalorder %s16, 1
      %p81 = scmp.ne.s32.totalorder %s76, %s78
      %p82 = scmp.eq.s32.totalorder %s16, 0
      %p83 = por %p81, %p82
      %p84 = scmp.ne.s32.totalorder %s76, %s78
      %p85 = scmp.eq.s32.totalorder %s21, 1
      %p86 = por %p84, %p85
      %p87 = scmp.ne.s32.totalorder %s78, %s79
      %p88 = scmp.eq.s32.totalorder %s21, 0
      %p89 = por %p87, %p88
      %p90 = scmp.ne.s32.totalorder %s78, %s79
      %p91 = scmp.eq.s32.totalorder %s22, 1
      %p92 = por %p90, %p91
      %p94 = scmp.ne.s32.totalorder %s79, %s93
      %p95 = scmp.eq.s32.totalorder %s22, 0
      %p96 = por %p94, %p95
      %s98 = sadd.s32 %s97, 1
      %p101 = scmp.eq.s32.totalorder %s16, 1
      %p102 = scmp.ne.s32.totalorder %s97, %s99
      %p103 = scmp.eq.s32.totalorder %s16, 0
      %p104 = por %p102, %p103
      %p105 = scmp.ne.s32.totalorder %s97, %s99
      %p106 = scmp.eq.s32.totalorder %s21, 1
      %p107 = por %p105, %p106
      %p108 = scmp.ne.s32.totalorder %s99, %s100
      %p109 = scmp.eq.s32.totalorder %s21, 0
      %p110 = por %p108, %p109
      %p111 = scmp.ne.s32.totalorder %s99, %s100
      %p112 = scmp.eq.s32.totalorder %s22, 1
      %p113 = por %p111, %p112
      %p115 = scmp.ne.s32.totalorder %s100, %s114
      %p116 = scmp.eq.s32.totalorder %s22, 0
      %p117 = por %p115, %p116
      %p118 = scmp.le.s32.totalorder 1, %s16
      %p119 = scmp.lt.s32.totalorder %s16, 3
      %p120 = pnand %p118, %p119
      %p121 = pneg %p120
      // Predicated region
      $region9: #{tpu_custom_call.1} parent=5 // pred_check
        _
      $region10: #{tpu_custom_call.1} parent=5 // pred_check_branch
        %123 = sbr.rel (%p120) target = $region12
      $region11: #{tpu_custom_call.1} parent=5 // pred_region
        %s124 = ssub.s32 %s16, 1
        // Predicated region
        $region13: #{tpu_custom_call.1} parent=11 // pred_check
          %p125 = pneg %p89
        $region14: #{tpu_custom_call.1} parent=11 // pred_check_branch
          %127 = sbr.rel (%p125) target = $region16
        $region15: #{tpu_custom_call.1} parent=11 // pred_region
          %s129 = ssub.s32 128, 128
          %130 = vsyncadd [#allocation12], %s129
          %s132 = sshll.u32 [#allocation13], 4
          %s133 = int_to_ptr.vmem [resolvable:$true] %s132
          %135 = dma.hbm_to_vmem [thread:$0]  %s2, 128, %s133, [#allocation12]
        $region16: #{tpu_custom_call.1} parent=11 // pred_fallthru
          _
      $region12: #{tpu_custom_call.1} parent=5 // pred_fallthru
        _
      %p136 = scmp.lt.s32.totalorder %s16, 2
      // Predicated region
      $region17: #{tpu_custom_call.1} parent=5 // pred_check
        %p137 = pneg %p136
      $region18: #{tpu_custom_call.1} parent=5 // pred_check_branch
        %139 = sbr.rel (%p137) target = $region20
      $region19: #{tpu_custom_call.1} parent=5 // pred_region
        // Predicated region
        $region21: #{tpu_custom_call.1} parent=19 // pred_check
          %p140 = pneg %p36
        $region22: #{tpu_custom_call.1} parent=19 // pred_check_branch
          %142 = sbr.rel (%p140) target = $region24
        $region23: #{tpu_custom_call.1} parent=19 // pred_region
          %s143 = sand.u32 %s26, 1
          %s144 = scalar_lea.sflag [#allocation9], %s143
          %s145 = sand.u32 %s26, 1
          %s146 = smul.addr %s145, 8
          %s147 = scalar_lea.vmem [#allocation8], %s146
          %s149 = ssub.s32 128, 128
          %150 = vsyncadd %s144, %s149
          %s151 = smul.addr %s16, 128
          %s152 = scalar_lea.hbm %s0, %s151
          %s154 = sshll.u32 %s147, 4
          %s155 = int_to_ptr.vmem [resolvable:$true] %s154
          %157 = dma.hbm_to_vmem [thread:$0]  %s152, 128, %s155, %s144
        $region24: #{tpu_custom_call.1} parent=19 // pred_fallthru
          _
        // Predicated region
        $region25: #{tpu_custom_call.1} parent=19 // pred_check
          %p158 = pneg %p62
        $region26: #{tpu_custom_call.1} parent=19 // pred_check_branch
          %160 = sbr.rel (%p158) target = $region28
        $region27: #{tpu_custom_call.1} parent=19 // pred_region
          %s161 = sand.u32 %s16, 1
          %s162 = scalar_lea.sflag [#allocation12], %s161
          %s163 = sand.u32 %s52, 1
          %s164 = smul.addr %s163, 8
          %s165 = scalar_lea.vmem [#allocation11], %s164
          %s167 = ssub.s32 128, 128
          %168 = vsyncadd %s162, %s167
          %s169 = smul.addr %s16, 128
          %s170 = scalar_lea.hbm %s1, %s169
          %s172 = sshll.u32 %s165, 4
          %s173 = int_to_ptr.vmem [resolvable:$true] %s172
          %175 = dma.hbm_to_vmem [thread:$0]  %s170, 128, %s173, %s162
        $region28: #{tpu_custom_call.1} parent=19 // pred_fallthru
          _
      $region20: #{tpu_custom_call.1} parent=5 // pred_fallthru
        _
      %p176 = scmp.le.s32.totalorder 1, %s16
      %p177 = scmp.lt.s32.totalorder %s16, 3
      %p178 = pnand %p176, %p177
      %p179 = pneg %p178
      // Predicated region
      $region29: #{tpu_custom_call.1} parent=5 // pred_check
        _
      $region30: #{tpu_custom_call.1} parent=5 // pred_check_branch
        %181 = sbr.rel (%p178) target = $region32
      $region31: #{tpu_custom_call.1} parent=5 // pred_region
        %s182 = ssub.s32 %s16, 1
        %s183 = sand.u32 %s29, 1
        %s184 = scalar_lea.sflag [#allocation9], %s183
        %s185 = sand.u32 %s29, 1
        %s186 = smul.addr %s185, 8
        %s187 = scalar_lea.vmem [#allocation8], %s186
        // Predicated region
        $region33: #{tpu_custom_call.1} parent=31 // pred_check
          %p188 = pneg %p42
        $region34: #{tpu_custom_call.1} parent=31 // pred_check_branch
          %190 = sbr.rel (%p188) target = $region36
        $region35: #{tpu_custom_call.1} parent=31 // pred_region
          %191 = dma.done %s184, 128
        $region36: #{tpu_custom_call.1} parent=31 // pred_fallthru
          _
        %s192 = sand.u32 %s21, 1
        %s193 = scalar_lea.sflag [#allocation12], %s192
        %s194 = sand.u32 %s55, 1
        %s195 = smul.addr %s194, 8
        %s196 = scalar_lea.vmem [#allocation11], %s195
        // Predicated region
        $region37: #{tpu_custom_call.1} parent=31 // pred_check
          %p197 = pneg %p68
        $region38: #{tpu_custom_call.1} parent=31 // pred_check_branch
          %199 = sbr.rel (%p197) target = $region40
        $region39: #{tpu_custom_call.1} parent=31 // pred_region
          %200 = dma.done %s193, 128
        $region40: #{tpu_custom_call.1} parent=31 // pred_fallthru
          _
        // Predicated region
        $region41: #{tpu_custom_call.1} parent=31 // pred_check
          %p201 = pneg %p89
        $region42: #{tpu_custom_call.1} parent=31 // pred_check_branch
          %203 = sbr.rel (%p201) target = $region44
        $region43: #{tpu_custom_call.1} parent=31 // pred_region
          %204 = dma.done [#allocation12], 128
        $region44: #{tpu_custom_call.1} parent=31 // pred_fallthru
          _
        %s205 = sand.u32 %s29, 1
        %s206 = scalar_lea.sflag [#allocation9], %s205
        %s207 = sand.u32 %s29, 1
        %s208 = smul.addr %s207, 8
        %s209 = scalar_lea.vmem [#allocation8], %s208
        %p210 = pneg %p42
        %p211 = pneg %p39
        %s212 = sand.u32 %s21, 1
        %s213 = scalar_lea.sflag [#allocation12], %s212
        %s214 = sand.u32 %s55, 1
        %s215 = smul.addr %s214, 8
        %s216 = scalar_lea.vmem [#allocation11], %s215
        %p217 = pneg %p68
        %p218 = pneg %p65
        %p219 = pneg %p89
        %p220 = pneg %p86
        %p221 = pneg %p110
        %p222 = pneg %p107
        %p223 = scmp.eq.s32.totalorder %s21, 0
        // Predicated region
        $region45: #{tpu_custom_call.1} parent=31 // pred_check
          %p224 = pneg %p223
        $region46: #{tpu_custom_call.1} parent=31 // pred_check_branch
          %226 = sbr.rel (%p224) target = $region48
        $region47: #{tpu_custom_call.1} parent=31 // pred_region
          %vm227 = vcmask 7168
          %228 = vst.msk [vmem:[#allocation2] sm:$0xff] %vm227, -inf
          %229 = vst.msk [vmem:[#allocation3] sm:$0xff] %vm227, 0.0
          %vm230 = vcmask 64512
          %231 = vst.msk [vmem:[#allocation4] sm:$0xff] %vm230, 0.0
          %232 = vst.msk [vmem:[#allocation5] sm:$0xff] %vm227, -1.0
          %233 = vst.msk [vmem:[#allocation6] sm:$0xff] %vm227, 0
          %234 = vst.msk [vmem:[#allocation7] sm:$0xff] %vm227, 0.0
        $region48: #{tpu_custom_call.1} parent=31 // pred_fallthru
          _
        %v235 = vld [vmem:[%s187] sm:$0xff]
        %v236 = vld [vmem:[%s196] sm:$0xff]
        %s237 = smul.u32 %s21, 128
        %v238 = vlaneseq
        %v239 = vand.u32 %v238, 127
        %v240 = vstv %s237
        %v241 = vadd.s32 %v240, %v239
        %v242 = vld [vmem:[#allocation2] sm:$0xff]
        %243 = vmax.xlane.f32.xlu0 %v235
        %v244 = vpop.xlane.xlu0 %243
        %v245 = vmax.f32 %v242, %v244
        %v246 = vsub.f32 %v242, %v245
        %v247 = vmul.f32 %v246, 1.442695
        %v248 = vpow.pop %v247
        %250 = vset.pattern.permute.xlu0 0
        %251 = vperm.xlu0 %250, %v245
        %v252 = vpop.permute.xlu0 %251
        %v254 = vsub.f32 %v235, %v252
        %v255 = vmul.f32 %v254, 1.442695
        %v256 = vpow.pop %v255
        %v257 = vld [vmem:[#allocation3] sm:$0xff]
        %v258 = vmul.f32 %v248, %v257
        %259 = vadd.xlane.f32.xlu0 %v256
        %v260 = vpop.xlane.xlu0 %259
        %v261 = vadd.f32 %v258, %v260
        %vm262 = vcmask 7168
        %263 = vst.msk [vmem:[#allocation3] sm:$0xff] %vm262, %v261
        %v264 = vld [vmem:[#allocation4] sm:$0xff]
        %265 = vxpose.xlu0.b32.start [1/16] %v248, 128
        %266 = vxpose.xlu0.b32.cont [2/16] 0.0, 128
        %267 = vxpose.xlu0.b32.cont [3/16] 0.0, 128
        %268 = vxpose.xlu0.b32.cont [4/16] 0.0, 128
        %269 = vxpose.xlu0.b32.cont [5/16] 0.0, 128
        %270 = vxpose.xlu0.b32.cont [6/16] 0.0, 128
        %271 = vxpose.xlu0.b32.cont [7/16] 0.0, 128
        %272 = vxpose.xlu0.b32.cont [8/16] 0.0, 128
        %273 = vxpose.xlu0.b32.cont [9/16] 0.0, 128
        %274 = vxpose.xlu0.b32.cont [10/16] 0.0, 128
        %275 = vxpose.xlu0.b32.cont [11/16] 0.0, 128
        %276 = vxpose.xlu0.b32.cont [12/16] 0.0, 128
        %277 = vxpose.xlu0.b32.cont [13/16] 0.0, 128
        %278 = vxpose.xlu0.b32.cont [14/16] 0.0, 128
        %279 = vxpose.xlu0.b32.cont [15/16] 0.0, 128
        %280 = vxpose.xlu0.b32.end [16/16] 0.0, 128
        %v281 = vpop.trf.xlu0
        %v282 = vpop.trf.xlu0
        %v283 = vpop.trf.xlu0
        %v284 = vpop.trf.xlu0
        %v285 = vpop.trf.xlu0
        %v286 = vpop.trf.xlu0
        %v287 = vpop.trf.xlu0
        %v288 = vpop.trf.xlu0
        %v289 = vpop.trf.xlu0
        %v290 = vpop.trf.xlu0
        %v291 = vpop.trf.xlu0
        %v292 = vpop.trf.xlu0
        %v293 = vpop.trf.xlu0
        %v294 = vpop.trf.xlu0
        %v295 = vpop.trf.xlu0
        %v296 = vpop.trf.xlu0
        %298 = vset.pattern.permute.xlu0 0
        %299 = vperm.xlu0 %298, %v248
        %v300 = vpop.permute.xlu0 %299
        %v302 = vlaneseq
        %v303 = vshrl.u32 %v302, 7
        %v304 = vsub.s32 0, %v303
        %v305 = vrot.slane %v281, %v304
        %v306 = vmul.f32 %v300, %v305
        %v307 = vmul.f32 %v264, %v306
        %308 = vmatprep.subr.mxu0 0.0
        %309 = vmatpush1.xpose.msra.mxu0 %v256
        %310 = vmatprep.subr.mxu0 0.0
        %311 = vmatpush1.xpose.msra.mxu0 0.0
        %312 = vmatprep.subr.mxu0 0.0
        %313 = vmatpush1.xpose.msra.mxu0 0.0
        %314 = vmatprep.subr.mxu0 0.0
        %315 = vmatpush1.xpose.msra.mxu0 0.0
        %316 = vmatprep.subr.mxu0 0.0
        %317 = vmatpush1.xpose.msra.mxu0 0.0
        %318 = vmatprep.subr.mxu0 0.0
        %319 = vmatpush1.xpose.msra.mxu0 0.0
        %320 = vmatprep.subr.mxu0 0.0
        %321 = vmatpush1.xpose.msra.mxu0 0.0
        %322 = vmatprep.subr.mxu0 0.0
        %323 = vmatpush1.xpose.msra.mxu0 0.0
        %324 = vmatprep.subr.mxu0 0.0
        %325 = vmatpush1.xpose.msra.mxu0 0.0
        %326 = vmatprep.subr.mxu0 0.0
        %327 = vmatpush1.xpose.msra.mxu0 0.0
        %328 = vmatprep.subr.mxu0 0.0
        %329 = vmatpush1.xpose.msra.mxu0 0.0
        %330 = vmatprep.subr.mxu0 0.0
        %331 = vmatpush1.xpose.msra.mxu0 0.0
        %332 = vmatprep.subr.mxu0 0.0
        %333 = vmatpush1.xpose.msra.mxu0 0.0
        %334 = vmatprep.subr.mxu0 0.0
        %335 = vmatpush1.xpose.msra.mxu0 0.0
        %336 = vmatprep.subr.mxu0 0.0
        %337 = vmatpush1.xpose.msra.mxu0 0.0
        %338 = vmatprep.subr.mxu0 0.0
        %339 = vmatpush1.xpose.msra.mxu0 0.0
        %340 = vmatprep.subr.mxu0 0.0
        %341 = vmatpush1.xpose.msra.mxu0 0.0
        %342 = vmatprep.subr.mxu0 0.0
        %343 = vmatpush1.xpose.msra.mxu0 0.0
        %344 = vmatprep.subr.mxu0 0.0
        %345 = vmatpush1.xpose.msra.mxu0 0.0
        %346 = vmatprep.subr.mxu0 0.0
        %347 = vmatpush1.xpose.msra.mxu0 0.0
        %348 = vmatprep.subr.mxu0 0.0
        %349 = vmatpush1.xpose.msra.mxu0 0.0
        %350 = vmatprep.subr.mxu0 0.0
        %351 = vmatpush1.xpose.msra.mxu0 0.0
        %352 = vmatprep.subr.mxu0 0.0
        %353 = vmatpush1.xpose.msra.mxu0 0.0
        %354 = vmatprep.subr.mxu0 0.0
        %355 = vmatpush1.xpose.msra.mxu0 0.0
        %356 = vmatprep.subr.mxu0 0.0
        %357 = vmatpush1.xpose.msra.mxu0 0.0
        %358 = vmatprep.subr.mxu0 0.0
        %359 = vmatpush1.xpose.msra.mxu0 0.0
        %360 = vmatprep.subr.mxu0 0.0
        %361 = vmatpush1.xpose.msra.mxu0 0.0
        %362 = vmatprep.subr.mxu0 0.0
        %363 = vmatpush1.xpose.msra.mxu0 0.0
        %364 = vmatprep.subr.mxu0 0.0
        %365 = vmatpush1.xpose.msra.mxu0 0.0
        %366 = vmatprep.subr.mxu0 0.0
        %367 = vmatpush1.xpose.msra.mxu0 0.0
        %368 = vmatprep.subr.mxu0 0.0
        %369 = vmatpush1.xpose.msra.mxu0 0.0
        %370 = vmatprep.subr.mxu0 0.0
        %371 = vmatpush1.xpose.msra.mxu0 0.0
        %372 = vmatprep.mubr.f32.mxu0 0.0
        %373 = vmatmul.mubr.f32.gmra.mrb[0].mxu0 %v256
        %v374 = vpop.f32.mrb[0].mxu0
        %v375 = vadd.f32 0.0, %v374
        %v376 = vpop.f32.mrb[0].mxu0
        %377 = vdwg.mxu0
        %v378 = vadd.f32 %v307, %v375
        %vm379 = vcmask 64512
        %380 = vst.msk [vmem:[#allocation4] sm:$0xff] %vm379, %v378
        %v381 = vmul.f32 %v236, %v256
        %382 = vmax.xlane.f32.xlu0 %v381
        %v383 = vpop.xlane.xlu0 %382
        %vm384 = vcmp.eq.f32.partialorder %v381, %v383
        %v385 = vsel %vm384, %v241, 256
        %v386 = vand.u32 %v385, 65535
        %v387 = vshra.s32 %v385, 16
        %v388 = vcvt.s32.f32 %v386
        %v389 = vcvt.s32.f32 %v387
        %390 = vmin.xlane.f32.xlu0 %v389
        %v391 = vpop.xlane.xlu0 %390
        %vm392 = vcmp.eq.f32.partialorder %v389, %v391
        %v393 = vsel %vm392, %v388, inf
        %394 = vmin.xlane.f32.xlu0 %v393
        %v395 = vpop.xlane.xlu0 %394
        %v396 = vcvt.f32.s32 %v395
        %v397 = vcvt.f32.s32 %v391
        %v398 = vshll.u32 %v397, 16
        %v399 = vadd.s32 %v398, %v396
        %vm400 = vcmp.eq.s32.totalorder %v241, %v399
        %v401 = vsel %vm400, %v235, 0.0
        %402 = vadd.xlane.f32.xlu0 %v401
        %v403 = vpop.xlane.xlu0 %402
        %v404 = vld [vmem:[#allocation5] sm:$0xff]
        %v405 = vmul.f32 %v404, %v248
        %vm406 = vcmp.gt.f32.partialorder %v383, %v405
        %s407 = scalar_select %p223, 1, 0
        %v408 = vstv %s407
        %vm409 = vcmp.eq.s32.totalorder %v408, 1
        %vm410 = vmor %vm406, %vm409
        %v411 = vsel %vm410, %v383, %v405
        %412 = vst.msk [vmem:[#allocation5] sm:$0xff] %vm262, %v411
        %v413 = vld [vmem:[#allocation6] sm:$0xff]
        %v414 = vsel %vm410, %v399, %v413
        %415 = vst.msk [vmem:[#allocation6] sm:$0xff] %vm262, %v414
        %v416 = vld [vmem:[#allocation7] sm:$0xff]
        %v417 = vsel %vm410, %v403, %v416
        %418 = vst.msk [vmem:[#allocation7] sm:$0xff] %vm262, %v417
        %419 = vst.msk [vmem:[#allocation2] sm:$0xff] %vm262, %v245
        %p420 = scmp.eq.s32.totalorder %s21, 1
        // Predicated region
        $region49: #{tpu_custom_call.1} parent=31 // pred_check
          %p421 = pneg %p420
        $region50: #{tpu_custom_call.1} parent=31 // pred_check_branch
          %423 = sbr.rel (%p421) target = $region52
        $region51: #{tpu_custom_call.1} parent=31 // pred_region
          %v424 = vld [vmem:[#allocation3] sm:$0xff]
          %v425 = vrcp.pop %v424
          %v426 = vld [vmem:[#allocation2] sm:$0xff]
          %v427 = vlog2.pop %v424
          %v428 = vmul.f32 %v427, 0.6931472
          %v429 = vadd.f32 %v426, %v428
          %v430 = vld [vmem:[#allocation7] sm:$0xff]
          %v431 = vsub.f32 %v429, %v430
          %v432 = vsel %vm262, %v431, 0.0
          %433 = vadd.xlane.f32.xlu0 %v432
          %v434 = vpop.xlane.xlu0 %433
          %v435 = vrot.slane %v434, 4
          %v436 = vadd.f32 %v434, %v435
          %v437 = vrot.slane %v436, 2
          %v438 = vadd.f32 %v436, %v437
          %v439 = vrot.slane %v438, 1
          %v440 = vadd.f32 %v438, %v439
          %s441 = vtos %v440
          %v442 = vrcp.pop 8.0
          %s443 = vtos %v442
          %s444 = smul.f32 %s441, %s443
          %v445 = vld [vmem:[#allocation6] sm:$0xff]
          %v446 = vcvt.s32.f32 %v445
          %447 = vxpose.xlu0.b32.start [1/16] %v446, 128
          %448 = vxpose.xlu0.b32.cont [2/16] 0.0, 128
          %449 = vxpose.xlu0.b32.cont [3/16] 0.0, 128
          %450 = vxpose.xlu0.b32.cont [4/16] 0.0, 128
          %451 = vxpose.xlu0.b32.cont [5/16] 0.0, 128
          %452 = vxpose.xlu0.b32.cont [6/16] 0.0, 128
          %453 = vxpose.xlu0.b32.cont [7/16] 0.0, 128
          %454 = vxpose.xlu0.b32.cont [8/16] 0.0, 128
          %455 = vxpose.xlu0.b32.cont [9/16] 0.0, 128
          %456 = vxpose.xlu0.b32.cont [10/16] 0.0, 128
          %457 = vxpose.xlu0.b32.cont [11/16] 0.0, 128
          %458 = vxpose.xlu0.b32.cont [12/16] 0.0, 128
          %459 = vxpose.xlu0.b32.cont [13/16] 0.0, 128
          %460 = vxpose.xlu0.b32.cont [14/16] 0.0, 128
          %461 = vxpose.xlu0.b32.cont [15/16] 0.0, 128
          %462 = vxpose.xlu0.b32.end [16/16] 0.0, 128
          %v463 = vpop.trf.xlu0
          %v464 = vpop.trf.xlu0
          %v465 = vpop.trf.xlu0
          %v466 = vpop.trf.xlu0
          %v467 = vpop.trf.xlu0
          %v468 = vpop.trf.xlu0
          %v469 = vpop.trf.xlu0
          %v470 = vpop.trf.xlu0
          %v471 = vpop.trf.xlu0
          %v472 = vpop.trf.xlu0
          %v473 = vpop.trf.xlu0
          %v474 = vpop.trf.xlu0
          %v475 = vpop.trf.xlu0
          %v476 = vpop.trf.xlu0
          %v477 = vpop.trf.xlu0
          %v478 = vpop.trf.xlu0
          %480 = vset.pattern.permute.xlu0 0
          %481 = vperm.xlu0 %480, %v446
          %v482 = vpop.permute.xlu0 %481
          %v484 = vlaneseq
          %v485 = vshrl.u32 %v484, 7
          %v486 = vsub.s32 0, %v485
          %v487 = vrot.slane %v463, %v486
          %vm488 = vcmp.ne.f32.partialorder %v482, %v487
          %v489 = vsel %vm488, 1, 0
          %v490 = vcvt.s32.f32 %v489
          %v491 = vld [vmem:[#allocation4] sm:$0xff]
          %492 = vxpose.xlu0.b32.start [1/16] %v425, 128
          %493 = vxpose.xlu0.b32.cont [2/16] 0.0, 128
          %494 = vxpose.xlu0.b32.cont [3/16] 0.0, 128
          %495 = vxpose.xlu0.b32.cont [4/16] 0.0, 128
          %496 = vxpose.xlu0.b32.cont [5/16] 0.0, 128
          %497 = vxpose.xlu0.b32.cont [6/16] 0.0, 128
          %498 = vxpose.xlu0.b32.cont [7/16] 0.0, 128
          %499 = vxpose.xlu0.b32.cont [8/16] 0.0, 128
          %500 = vxpose.xlu0.b32.cont [9/16] 0.0, 128
          %501 = vxpose.xlu0.b32.cont [10/16] 0.0, 128
          %502 = vxpose.xlu0.b32.cont [11/16] 0.0, 128
          %503 = vxpose.xlu0.b32.cont [12/16] 0.0, 128
          %504 = vxpose.xlu0.b32.cont [13/16] 0.0, 128
          %505 = vxpose.xlu0.b32.cont [14/16] 0.0, 128
          %506 = vxpose.xlu0.b32.cont [15/16] 0.0, 128
          %507 = vxpose.xlu0.b32.end [16/16] 0.0, 128
          %v508 = vpop.trf.xlu0
          %v509 = vpop.trf.xlu0
          %v510 = vpop.trf.xlu0
          %v511 = vpop.trf.xlu0
          %v512 = vpop.trf.xlu0
          %v513 = vpop.trf.xlu0
          %v514 = vpop.trf.xlu0
          %v515 = vpop.trf.xlu0
          %v516 = vpop.trf.xlu0
          %v517 = vpop.trf.xlu0
          %v518 = vpop.trf.xlu0
          %v519 = vpop.trf.xlu0
          %v520 = vpop.trf.xlu0
          %v521 = vpop.trf.xlu0
          %v522 = vpop.trf.xlu0
          %v523 = vpop.trf.xlu0
          %525 = vset.pattern.permute.xlu0 0
          %526 = vperm.xlu0 %525, %v425
          %v527 = vpop.permute.xlu0 %526
          %v529 = vlaneseq
          %v530 = vshrl.u32 %v529, 7
          %v531 = vsub.s32 0, %v530
          %v532 = vrot.slane %v508, %v531
          %v533 = vmul.f32 %v527, %v532
          %v534 = vmul.f32 %v491, %v533
          %v535 = vld [vmem:[#allocation13] sm:$0xff]
          %vm536 = vcmask 261120
          %v538 = vsel %vm536, %v535, 0
          %540 = vmatprep.subr.mxu0 0.0
          %541 = vmatpush1.xpose.msra.mxu0 %v538
          %542 = vmatprep.subr.mxu0 0.0
          %543 = vmatpush1.xpose.msra.mxu0 0.0
          %544 = vmatprep.subr.mxu0 0.0
          %545 = vmatpush1.xpose.msra.mxu0 0.0
          %546 = vmatprep.subr.mxu0 0.0
          %547 = vmatpush1.xpose.msra.mxu0 0.0
          %548 = vmatprep.subr.mxu0 0.0
          %549 = vmatpush1.xpose.msra.mxu0 0.0
          %550 = vmatprep.subr.mxu0 0.0
          %551 = vmatpush1.xpose.msra.mxu0 0.0
          %552 = vmatprep.subr.mxu0 0.0
          %553 = vmatpush1.xpose.msra.mxu0 0.0
          %554 = vmatprep.subr.mxu0 0.0
          %555 = vmatpush1.xpose.msra.mxu0 0.0
          %556 = vmatprep.subr.mxu0 0.0
          %557 = vmatpush1.xpose.msra.mxu0 0.0
          %558 = vmatprep.subr.mxu0 0.0
          %559 = vmatpush1.xpose.msra.mxu0 0.0
          %560 = vmatprep.subr.mxu0 0.0
          %561 = vmatpush1.xpose.msra.mxu0 0.0
          %562 = vmatprep.subr.mxu0 0.0
          %563 = vmatpush1.xpose.msra.mxu0 0.0
          %564 = vmatprep.subr.mxu0 0.0
          %565 = vmatpush1.xpose.msra.mxu0 0.0
          %566 = vmatprep.subr.mxu0 0.0
          %567 = vmatpush1.xpose.msra.mxu0 0.0
          %568 = vmatprep.subr.mxu0 0.0
          %569 = vmatpush1.xpose.msra.mxu0 0.0
          %570 = vmatprep.subr.mxu0 0.0
          %571 = vmatpush1.xpose.msra.mxu0 0.0
          %572 = vmatprep.subr.mxu0 0.0
          %573 = vmatpush1.xpose.msra.mxu0 0.0
          %574 = vmatprep.subr.mxu0 0.0
          %575 = vmatpush1.xpose.msra.mxu0 0.0
          %576 = vmatprep.subr.mxu0 0.0
          %577 = vmatpush1.xpose.msra.mxu0 0.0
          %578 = vmatprep.subr.mxu0 0.0
          %579 = vmatpush1.xpose.msra.mxu0 0.0
          %580 = vmatprep.subr.mxu0 0.0
          %581 = vmatpush1.xpose.msra.mxu0 0.0
          %582 = vmatprep.subr.mxu0 0.0
          %583 = vmatpush1.xpose.msra.mxu0 0.0
          %584 = vmatprep.subr.mxu0 0.0
          %585 = vmatpush1.xpose.msra.mxu0 0.0
          %586 = vmatprep.subr.mxu0 0.0
          %587 = vmatpush1.xpose.msra.mxu0 0.0
          %588 = vmatprep.subr.mxu0 0.0
          %589 = vmatpush1.xpose.msra.mxu0 0.0
          %590 = vmatprep.subr.mxu0 0.0
          %591 = vmatpush1.xpose.msra.mxu0 0.0
          %592 = vmatprep.subr.mxu0 0.0
          %593 = vmatpush1.xpose.msra.mxu0 0.0
          %594 = vmatprep.subr.mxu0 0.0
          %595 = vmatpush1.xpose.msra.mxu0 0.0
          %596 = vmatprep.subr.mxu0 0.0
          %597 = vmatpush1.xpose.msra.mxu0 0.0
          %598 = vmatprep.subr.mxu0 0.0
          %599 = vmatpush1.xpose.msra.mxu0 0.0
          %600 = vmatprep.subr.mxu0 0.0
          %601 = vmatpush1.xpose.msra.mxu0 0.0
          %602 = vmatprep.subr.mxu0 0.0
          %603 = vmatpush1.xpose.msra.mxu0 0.0
          %604 = vmatprep.mubr.f32.mxu0 0.0
          %605 = vmatmul.mubr.f32.gmra.mrb[0].mxu0 %v538
          %v606 = vpop.f32.mrb[0].mxu0
          %v607 = vadd.f32 0.0, %v606
          %v608 = vpop.f32.mrb[0].mxu0
          %609 = vdwg.mxu0
          %v610 = vmul.f32 %v535, %v535
          %v611 = vsel %vm536, %v610, 0.0
          %612 = vadd.xlane.f32.xlu0 %v611
          %v613 = vpop.xlane.xlu0 %612
          %614 = vxpose.xlu0.b32.start [1/16] %v613, 128
          %615 = vxpose.xlu0.b32.cont [2/16] 0.0, 128
          %616 = vxpose.xlu0.b32.cont [3/16] 0.0, 128
          %617 = vxpose.xlu0.b32.cont [4/16] 0.0, 128
          %618 = vxpose.xlu0.b32.cont [5/16] 0.0, 128
          %619 = vxpose.xlu0.b32.cont [6/16] 0.0, 128
          %620 = vxpose.xlu0.b32.cont [7/16] 0.0, 128
          %621 = vxpose.xlu0.b32.cont [8/16] 0.0, 128
          %622 = vxpose.xlu0.b32.cont [9/16] 0.0, 128
          %623 = vxpose.xlu0.b32.cont [10/16] 0.0, 128
          %624 = vxpose.xlu0.b32.cont [11/16] 0.0, 128
          %625 = vxpose.xlu0.b32.cont [12/16] 0.0, 128
          %626 = vxpose.xlu0.b32.cont [13/16] 0.0, 128
          %627 = vxpose.xlu0.b32.cont [14/16] 0.0, 128
          %628 = vxpose.xlu0.b32.cont [15/16] 0.0, 128
          %629 = vxpose.xlu0.b32.end [16/16] 0.0, 128
          %v630 = vpop.trf.xlu0
          %v631 = vpop.trf.xlu0
          %v632 = vpop.trf.xlu0
          %v633 = vpop.trf.xlu0
          %v634 = vpop.trf.xlu0
          %v635 = vpop.trf.xlu0
          %v636 = vpop.trf.xlu0
          %v637 = vpop.trf.xlu0
          %v638 = vpop.trf.xlu0
          %v639 = vpop.trf.xlu0
          %v640 = vpop.trf.xlu0
          %v641 = vpop.trf.xlu0
          %v642 = vpop.trf.xlu0
          %v643 = vpop.trf.xlu0
          %v644 = vpop.trf.xlu0
          %v645 = vpop.trf.xlu0
          %v646 = vlaneseq
          %v647 = vshrl.u32 %v646, 7
          %v648 = vsub.s32 0, %v647
          %v649 = vrot.slane %v630, %v648
          %v650 = vadd.f32 %v613, %v649
          %v651 = vmul.f32 %v607, 2.0
          %v652 = vsub.f32 %v650, %v651
          %v653 = vsub.f32 0.0, %v652
          %v654 = vmul.f32 %v653, 1.442695
          %v655 = vpow.pop %v654
          %v656 = vmul.f32 %v655, %v534
          %v657 = vmul.f32 %v656, %v490
          %v658 = vsel %vm379, %v657, 0.0
          %659 = vadd.xlane.f32.xlu0 %v658
          %v660 = vpop.xlane.xlu0 %659
          %v661 = vrot.slane %v660, 4
          %v662 = vadd.f32 %v660, %v661
          %v663 = vrot.slane %v662, 2
          %v664 = vadd.f32 %v662, %v663
          %v665 = vrot.slane %v664, 1
          %v666 = vadd.f32 %v664, %v665
          %s667 = vtos %v666
          %v668 = vrcp.pop 64.0
          %s669 = vtos %v668
          %s670 = smul.f32 %s667, %s669
          %s671 = ssub.f32 0.0, %s670
          %s672 = smul.f32 %s671, 2.0
          %s673 = sadd.f32 %s444, %s672
          %v674 = vstv %s673
          %vm675 = vcmask 0
          %676 = vst.msk [vmem:[#allocation14] sm:$0x1] %vm675, %v674
        $region52: #{tpu_custom_call.1} parent=31 // pred_fallthru
          _
        // Predicated region
        $region53: #{tpu_custom_call.1} parent=31 // pred_check
          %p677 = pneg %p107
        $region54: #{tpu_custom_call.1} parent=31 // pred_check_branch
          %679 = sbr.rel (%p677) target = $region56
        $region55: #{tpu_custom_call.1} parent=31 // pred_region
          %s681 = ssub.s32 16, 16
          %682 = vsyncadd [#allocation10], %s681
          %s684 = sshll.u32 [#allocation14], 4
          %s685 = int_to_ptr.vmem [resolvable:$true] %s684
          %687 = dma.vmem_to_hbm [thread:$0]  %s685, 16, %s3, [#allocation10]
        $region56: #{tpu_custom_call.1} parent=31 // pred_fallthru
          _
        // Predicated region
        $region57: #{tpu_custom_call.1} parent=31 // pred_check
          %p688 = pneg %p107
        $region58: #{tpu_custom_call.1} parent=31 // pred_check_branch
          %690 = sbr.rel (%p688) target = $region60
        $region59: #{tpu_custom_call.1} parent=31 // pred_region
          %691 = dma.done [#allocation10], 16
        $region60: #{tpu_custom_call.1} parent=31 // pred_fallthru
          _
      $region32: #{tpu_custom_call.1} parent=5 // pred_fallthru
        _
      %p692 = scmp.le.s32.totalorder 2, %s16
      // Predicated region
      $region61: #{tpu_custom_call.1} parent=5 // pred_check
        %p693 = pneg %p692
      $region62: #{tpu_custom_call.1} parent=5 // pred_check_branch
        %695 = sbr.rel (%p693) target = $region64
      $region63: #{tpu_custom_call.1} parent=5 // pred_region
        %s696 = ssub.s32 %s16, 2
      $region64: #{tpu_custom_call.1} parent=5 // pred_fallthru
        _
    $region6: #{tpu_custom_call.1} parent=1 // loop_footer
      %s20 = sadd.s32 1, %s16
    $region7: #{tpu_custom_call.1} parent=1 // loop_footer_branch
      %15 = sbr.rel target = $region3
    $region8: #{tpu_custom_call.1} parent=1 // loop_exit
      _
    %697 = vsyncpa [#allocation9], 1
    %s698 = scalar_lea.sflag [#allocation9], 1
    %699 = vsyncpa %s698, 1
    %700 = vsyncpa [#allocation12], 1
    %s701 = scalar_lea.sflag [#allocation12], 1
    %702 = vsyncpa %s701, 1
    %703 = vsyncpa [#allocation10], 1
    %s704 = scalar_lea.sflag [#allocation10], 1
    %705 = vsyncpa %s704, 1

</llo_original>
